<compile_context>
chip_gen: v5e
topology: v5e:2x2
jax: 0.10.0
libtpu: 0.0.40
codegen_flags: <defaults>
</compile_context>

<pallas_src>
import math
import jax
import jax.numpy as jnp
from jax.experimental import pallas as pl
from jax.experimental.pallas import tpu as pltpu

# Small, self-consistent sizes.
B = 2                 # batch
M = 16                # number of nodes (sequence length)
F = 32                # hidden_features
H = 4                 # num_attention_heads
D = F // H            # per-head dim
NUM_NEIGHBORS = 5     # top-k neighbors kept per node
BM = B * M            # batch folded into matmul rows


def mhsa_kernel(x_ref, masks_ref, wqkv_ref, wo_ref, bqkv_ref, bo_ref, out_ref):
    """Single grid step: fused QKV + all-head masked attention + output proj + mish."""
    x = x_ref[...]                     # (BM, F)   bf16
    key_mask = masks_ref[0]            # (BM, BM)  f32: same-batch AND key-unmasked
    edge_mask = masks_ref[1]           # (BM, BM)  f32: block-diagonal top-k neighbors

    # Fused Q/K/V projection: one bf16 MXU matmul + one bias add.  The Q block
    # of wqkv/bqkv is pre-scaled by 1/sqrt(D) in the wrapper.
    qkv = jnp.dot(x, wqkv_ref[...], preferred_element_type=jnp.float32) + bqkv_ref[...]
    q = qkv[:, 0 * F:1 * F]
    k = qkv[:, 1 * F:2 * F]
    v = qkv[:, 2 * F:3 * F]

    # All head scores with a single batched matmul kept in registers
    # (no VMEM score scratch, no store->load stall before the softmax).
    q_h = jnp.stack([q[:, h * D:(h + 1) * D] for h in range(H)],
                    axis=0).astype(jnp.bfloat16)                  # (H, BM, D)
    k_h = jnp.stack([k[:, h * D:(h + 1) * D] for h in range(H)],
                    axis=0).astype(jnp.bfloat16)                  # (H, BM, D)
    s = jnp.einsum('hmd,hnd->hmn', q_h, k_h,
                   preferred_element_type=jnp.float32)            # (H, BM, BM) f32

    # Masked softmax + top-k renormalization, once over ALL heads, in f32.
    # (-1e12 on the already-scaled scores underflows to exactly 0 probability,
    #  matching the reference's mask-before-scale ordering; cross-batch keys
    #  get the same fill and contribute exactly 0.)
    s = jnp.where(key_mask[None] == 0.0, -1e12, s)
    e = jnp.exp(s - jnp.max(s, axis=-1, keepdims=True))
    p = e * pl.reciprocal(jnp.sum(e, axis=-1, keepdims=True), approx=True)
    p = p * edge_mask[None]                                       # keep top-k neighbors
    p = p * pl.reciprocal(jnp.sum(p, axis=-1, keepdims=True) + 1e-5, approx=True)
    p = p.astype(jnp.bfloat16)
    # TODO(synk): nn.Dropout on the attention map omitted (inference / eval mode).

    # Per-head PV + output-projection accumulation: o = sum_h (p_h @ v_h) @ Wo_h
    # (no (M,F) concat scratch, no masked 8-lane stores).
    o = None
    for h in range(H):
        v_h = v[:, h * D:(h + 1) * D].astype(jnp.bfloat16)               # (BM, D)
        pv = jnp.dot(p[h], v_h, preferred_element_type=jnp.float32)       # (BM, D)
        wo_h = wo_ref[h].astype(jnp.bfloat16)                             # (D, F)
        contrib = jnp.dot(pv.astype(jnp.bfloat16), wo_h,
                          preferred_element_type=jnp.float32)             # (BM, F)
        o = contrib if o is None else o + contrib
    o = o + bo_ref[...]

    # layers[3] output activation: mish.
    out_ref[...] = o * jnp.tanh(jax.nn.softplus(o))


def mhsa_forward(x, edge, mask, params):
    wq, bq, wk, bk, wv, bv, wo, bo = params
    inv_sqrt_d = 1.0 / math.sqrt(D)

    # Fold 1/sqrt(D) into the Q projection; fuse Q/K/V weights into one (F,3F)
    # bf16 operand.  Wo stays a separate operand (pre-split by head rows) so
    # the kernel never lane-slices a packed 128-wide weight.
    wqkv = jnp.concatenate([wq * inv_sqrt_d, wk, wv], axis=1).astype(jnp.bfloat16)
    bqkv = jnp.concatenate([bq * inv_sqrt_d, bk, bv], axis=1)        # (1, 3F) f32
    wo_heads = wo.reshape(H, D, F)                                   # (H, D, F) f32

    # Top-num_neighbors edge mask via the exact double-argsort recipe
    # (weight independent), laid out block-diagonally over (B*M, B*M).
    rank = jnp.argsort(jnp.argsort(-edge, axis=-1), axis=-1)
    em = (rank < NUM_NEIGHBORS).astype(jnp.float32)                  # (B, M, M)
    edge_bd = jnp.zeros((BM, BM), jnp.float32)
    for b in range(B):
        edge_bd = edge_bd.at[b * M:(b + 1) * M, b * M:(b + 1) * M].set(em[b])

    # Combined key mask: key j visible to query i iff same batch AND node j
    # unmasked (keeps the batch-folded attention exact).
    batch_ids = jnp.arange(BM) // M
    same_batch = (batch_ids[:, None] == batch_ids[None, :]).astype(jnp.float32)
    key_mask = same_batch * mask.reshape(BM)[None, :]
    masks = jnp.stack([key_mask, edge_bd], axis=0)                   # (2, BM, BM) f32

    x2d = x.reshape(BM, F).astype(jnp.bfloat16)

    cost = pl.CostEstimate(
        flops=2 * BM * F * 3 * F + 4 * H * BM * BM * D + 2 * H * BM * D * F,
        transcendentals=H * BM * BM + 2 * H * BM + 3 * BM * F,
        bytes_accessed=(BM * F * 2 + 2 * BM * BM * 4 + F * 3 * F * 2
                        + H * D * F * 4 + 3 * F * 4 + F * 4 + BM * F * 4))

    out2d = pl.pallas_call(
        mhsa_kernel,
        out_shape=jax.ShapeDtypeStruct((BM, F), jnp.float32),
        grid=(1,),
        in_specs=[
            pl.BlockSpec((BM, F), lambda i: (0, 0)),           # node features (bf16)
            pl.BlockSpec((2, BM, BM), lambda i: (0, 0, 0)),    # key mask + top-k edge mask
            pl.BlockSpec((F, 3 * F), lambda i: (0, 0)),        # fused QKV weights (bf16)
            pl.BlockSpec((H, D, F), lambda i: (0, 0, 0)),      # Wo split by head rows
            pl.BlockSpec((1, 3 * F), lambda i: (0, 0)),        # fused QKV bias
            pl.BlockSpec((1, F), lambda i: (0, 0)),            # output bias
        ],
        out_specs=pl.BlockSpec((BM, F), lambda i: (0, 0)),
        compiler_params=pltpu.CompilerParams(
            dimension_semantics=("arbitrary",)),  # single step: megacore buys nothing here
        cost_estimate=cost,
    )(x2d, masks, wqkv, wo_heads, bqkv, bo)

    return out2d.reshape(B, M, F)


def mhsa_reference(x, edge, mask, params):
    """Pure-JAX reference mirroring the PyTorch forward exactly (per batch)."""
    wq, bq, wk, bk, wv, bv, wo, bo = params
    hp = jax.lax.Precision.HIGHEST

    def proj(w, b):
        y = jnp.dot(x, w, precision=hp) + b
        return y.reshape(B, M, H, D).transpose(0, 2, 1, 3)   # b h m d

    q, k, v = proj(wq, bq), proj(wk, bk), proj(wv, bv)
    s = jnp.einsum('bhmd,bhnd->bhmn', q, k, precision=hp)
    s = jnp.where(mask[:, None, None, :] == 0.0, -1e12, s)
    s = jax.nn.softmax(s / math.sqrt(D), axis=-1)
    rank = jnp.argsort(jnp.argsort(-edge, axis=-1), axis=-1)
    em = (rank < NUM_NEIGHBORS).astype(jnp.float32)
    s = s * em[:, None, :, :]
    s = s / (jnp.sum(s, axis=-1, keepdims=True) + 1e-5)
    out = jnp.einsum('bhmn,bhnd->bhmd', s, v, precision=hp)
    out = out.transpose(0, 2, 1, 3).reshape(B, M, F)
    o = jnp.dot(out, wo, precision=hp) + bo
    return o * jnp.tanh(jax.nn.softplus(o))


if __name__ == "__main__":
    key = jax.random.PRNGKey(0)
    kx, ke, km, *kw = jax.random.split(key, 12)

    x = jax.random.normal(kx, (B, M, F), dtype=jnp.float32)
    edge = jax.random.normal(ke, (B, M, M), dtype=jnp.float32)
    # binary node mask with a few masked-out positions
    mask = (jax.random.uniform(km, (B, M)) > 0.2).astype(jnp.float32)

    def lin_init(kw_, kb_):
        scale = 1.0 / math.sqrt(F)
        w = jax.random.uniform(kw_, (F, F), minval=-scale, maxval=scale,
                               dtype=jnp.float32)
        b = jax.random.uniform(kb_, (1, F), minval=-scale, maxval=scale,
                               dtype=jnp.float32)
        return w, b

    wq, bq = lin_init(kw[0], kw[1])
    wk, bk = lin_init(kw[2], kw[3])
    wv, bv = lin_init(kw[4], kw[5])
    wo, bo = lin_init(kw[6], kw[7])
    params = (wq, bq, wk, bk, wv, bv, wo, bo)

    out = mhsa_forward(x, edge, mask, params)
    out = jax.block_until_ready(out)

    ref = mhsa_reference(x, edge, mask, params)
    assert out.shape == (B, M, F)
    # 2e-2 tolerance: accommodates bf16 MXU operands (f32 accumulation) and the
    # approx-reciprocal softmax divides; reference uses f32 HIGHEST precision.
    assert jnp.allclose(out, ref, atol=2e-2, rtol=2e-2), "mismatch vs reference"

    print("KERNEL_OK")
</pallas_src>

<mosaic_0001>
module attributes {stable_mosaic.version = 11 : i64} {
  func.func @mhsa_kernel(%arg0: i32, %arg1: memref<32x32xbf16, #tpu.memory_space<vmem>>, %arg2: memref<2x32x32xf32, #tpu.memory_space<vmem>>, %arg3: memref<32x96xbf16, #tpu.memory_space<vmem>>, %arg4: memref<4x8x32xf32, #tpu.memory_space<vmem>>, %arg5: memref<1x96xf32, #tpu.memory_space<vmem>>, %arg6: memref<1x32xf32, #tpu.memory_space<vmem>>, %arg7: memref<32x32xf32, #tpu.memory_space<vmem>>) attributes {dimension_semantics = [#tpu.dimension_semantics<arbitrary>], iteration_bounds = array<i64: 1>, scalar_prefetch = 0 : i64, scratch_operands = 0 : i64, tpu.core_type = #tpu.core_type<tc>, window_params = [{pipeline_mode = #tpu.pipeline_mode<synchronous>, transform_indices = @transform_0, window_bounds = array<i64: 32, 32>}, {pipeline_mode = #tpu.pipeline_mode<synchronous>, transform_indices = @transform_1, window_bounds = array<i64: 2, 32, 32>}, {pipeline_mode = #tpu.pipeline_mode<synchronous>, transform_indices = @transform_2, window_bounds = array<i64: 32, 96>}, {pipeline_mode = #tpu.pipeline_mode<synchronous>, transform_indices = @transform_3, window_bounds = array<i64: 4, 8, 32>}, {pipeline_mode = #tpu.pipeline_mode<synchronous>, transform_indices = @transform_4, window_bounds = array<i64: 1, 96>}, {pipeline_mode = #tpu.pipeline_mode<synchronous>, transform_indices = @transform_5, window_bounds = array<i64: 1, 32>}, {pipeline_mode = #tpu.pipeline_mode<synchronous>, transform_indices = @transform_6, window_bounds = array<i64: 32, 32>}]} {
    %c0 = arith.constant 0 : index
    %c0_0 = arith.constant 0 : index
    %0 = vector.load %arg1[%c0, %c0_0] : memref<32x32xbf16, #tpu.memory_space<vmem>>, vector<32x32xbf16>
    %c0_1 = arith.constant 0 : index
    %c0_2 = arith.constant 0 : index
    %c0_3 = arith.constant 0 : index
    %1 = vector.load %arg2[%c0_1, %c0_2, %c0_3] : memref<2x32x32xf32, #tpu.memory_space<vmem>>, vector<1x32x32xf32>
    %2 = vector.shape_cast %1 : vector<1x32x32xf32> to vector<32x32xf32>
    %c1 = arith.constant 1 : index
    %c0_4 = arith.constant 0 : index
    %c0_5 = arith.constant 0 : index
    %3 = vector.load %arg2[%c1, %c0_4, %c0_5] : memref<2x32x32xf32, #tpu.memory_space<vmem>>, vector<1x32x32xf32>
    %4 = vector.shape_cast %3 : vector<1x32x32xf32> to vector<32x32xf32>
    %c0_6 = arith.constant 0 : index
    %c0_7 = arith.constant 0 : index
    %5 = vector.load %arg3[%c0_6, %c0_7] : memref<32x96xbf16, #tpu.memory_space<vmem>>, vector<32x96xbf16>
    %cst = arith.constant dense<0.000000e+00> : vector<32x96xf32>
    %6 = tpu.matmul %0, %5, %cst {dimension_numbers = #tpu.dot_dimension_numbers<[1], [0], [0], [1], [0, 0, 1, 1], [], []>} : vector<32x32xbf16>, vector<32x96xbf16>, vector<32x96xf32> -> vector<32x96xf32>
    %c0_8 = arith.constant 0 : index
    %c0_9 = arith.constant 0 : index
    %7 = vector.load %arg5[%c0_8, %c0_9] : memref<1x96xf32, #tpu.memory_space<vmem>>, vector<1x96xf32>
    %8 = vector.broadcast %7 : vector<1x96xf32> to vector<32x96xf32>
    %9 = arith.addf %6, %8 : vector<32x96xf32>
    %10 = vector.extract_strided_slice %9 {offsets = [0, 0], sizes = [32, 32], strides = [1, 1]} : vector<32x96xf32> to vector<32x32xf32>
    %11 = vector.extract_strided_slice %9 {offsets = [0, 32], sizes = [32, 32], strides = [1, 1]} : vector<32x96xf32> to vector<32x32xf32>
    %12 = vector.extract_strided_slice %9 {offsets = [0, 64], sizes = [32, 32], strides = [1, 1]} : vector<32x96xf32> to vector<32x32xf32>
    %13 = vector.extract_strided_slice %10 {offsets = [0, 0], sizes = [32, 8], strides = [1, 1]} : vector<32x32xf32> to vector<32x8xf32>
    %14 = vector.extract_strided_slice %10 {offsets = [0, 8], sizes = [32, 8], strides = [1, 1]} : vector<32x32xf32> to vector<32x8xf32>
    %15 = vector.extract_strided_slice %10 {offsets = [0, 16], sizes = [32, 8], strides = [1, 1]} : vector<32x32xf32> to vector<32x8xf32>
    %16 = vector.extract_strided_slice %10 {offsets = [0, 24], sizes = [32, 8], strides = [1, 1]} : vector<32x32xf32> to vector<32x8xf32>
    %17 = vector.shape_cast %13 : vector<32x8xf32> to vector<1x32x8xf32>
    %18 = vector.shape_cast %14 : vector<32x8xf32> to vector<1x32x8xf32>
    %19 = vector.shape_cast %15 : vector<32x8xf32> to vector<1x32x8xf32>
    %20 = vector.shape_cast %16 : vector<32x8xf32> to vector<1x32x8xf32>
    %21 = tpu.concatenate %17, %18, %19, %20 in 0 : vector<1x32x8xf32>, vector<1x32x8xf32>, vector<1x32x8xf32>, vector<1x32x8xf32> -> vector<4x32x8xf32>
    %22 = arith.truncf %21 : vector<4x32x8xf32> to vector<4x32x8xbf16>
    %23 = vector.extract_strided_slice %11 {offsets = [0, 0], sizes = [32, 8], strides = [1, 1]} : vector<32x32xf32> to vector<32x8xf32>
    %24 = vector.extract_strided_slice %11 {offsets = [0, 8], sizes = [32, 8], strides = [1, 1]} : vector<32x32xf32> to vector<32x8xf32>
    %25 = vector.extract_strided_slice %11 {offsets = [0, 16], sizes = [32, 8], strides = [1, 1]} : vector<32x32xf32> to vector<32x8xf32>
    %26 = vector.extract_strided_slice %11 {offsets = [0, 24], sizes = [32, 8], strides = [1, 1]} : vector<32x32xf32> to vector<32x8xf32>
    %27 = vector.shape_cast %23 : vector<32x8xf32> to vector<1x32x8xf32>
    %28 = vector.shape_cast %24 : vector<32x8xf32> to vector<1x32x8xf32>
    %29 = vector.shape_cast %25 : vector<32x8xf32> to vector<1x32x8xf32>
    %30 = vector.shape_cast %26 : vector<32x8xf32> to vector<1x32x8xf32>
    %31 = tpu.concatenate %27, %28, %29, %30 in 0 : vector<1x32x8xf32>, vector<1x32x8xf32>, vector<1x32x8xf32>, vector<1x32x8xf32> -> vector<4x32x8xf32>
    %32 = arith.truncf %31 : vector<4x32x8xf32> to vector<4x32x8xbf16>
    "tpu.trace_start"() <{level = 10 : i32, message = "hmd,hnd->hmn"}> : () -> ()
    %cst_10 = arith.constant dense<0.000000e+00> : vector<4x32x32xf32>
    %33 = tpu.matmul %22, %32, %cst_10 {dimension_numbers = #tpu.dot_dimension_numbers<[2], [2], [1], [1], [0, 0, 0, 1, 1, 1], [0], [0]>} : vector<4x32x8xbf16>, vector<4x32x8xbf16>, vector<4x32x32xf32> -> vector<4x32x32xf32>
    "tpu.trace_stop"() : () -> ()
    %34 = vector.shape_cast %2 : vector<32x32xf32> to vector<1x32x32xf32>
    %cst_11 = arith.constant 0.000000e+00 : f32
    %35 = vector.broadcast %cst_11 : f32 to vector<1x32x32xf32>
    %36 = arith.cmpf oeq, %34, %35 : vector<1x32x32xf32>
    %cst_12 = arith.constant -9.99999995E+11 : f32
    %37 = vector.shape_cast %36 : vector<1x32x32xi1> to vector<1x32x32xi1>
    %38 = vector.broadcast %37 : vector<1x32x32xi1> to vector<4x32x32xi1>
    %39 = vector.broadcast %cst_12 : f32 to vector<4x32x32xf32>
    %40 = arith.select %38, %39, %33 : vector<4x32x32xi1>, vector<4x32x32xf32>
    %cst_13 = arith.constant dense<0xFF800000> : vector<4x32xf32>
    %41 = vector.multi_reduction <maximumf>, %40, %cst_13 [2] : vector<4x32x32xf32> to vector<4x32xf32>
    %42 = vector.shape_cast %41 : vector<4x32xf32> to vector<4x32x1xf32>
    %43 = vector.broadcast %42 : vector<4x32x1xf32> to vector<4x32x32xf32>
    %44 = arith.subf %40, %43 : vector<4x32x32xf32>
    %45 = math.exp %44 : vector<4x32x32xf32>
    %cst_14 = arith.constant dense<0.000000e+00> : vector<4x32xf32>
    %46 = vector.multi_reduction <add>, %45, %cst_14 [2] : vector<4x32x32xf32> to vector<4x32xf32>
    %47 = vector.shape_cast %46 : vector<4x32xf32> to vector<4x32x1xf32>
    %48 = tpu.reciprocal %47 {approx = true} : vector<4x32x1xf32> -> vector<4x32x1xf32>
    %49 = vector.broadcast %48 : vector<4x32x1xf32> to vector<4x32x32xf32>
    %50 = arith.mulf %45, %49 : vector<4x32x32xf32>
    %51 = vector.shape_cast %4 : vector<32x32xf32> to vector<1x32x32xf32>
    %52 = vector.broadcast %51 : vector<1x32x32xf32> to vector<4x32x32xf32>
    %53 = arith.mulf %50, %52 : vector<4x32x32xf32>
    %cst_15 = arith.constant dense<0.000000e+00> : vector<4x32xf32>
    %54 = vector.multi_reduction <add>, %53, %cst_15 [2] : vector<4x32x32xf32> to vector<4x32xf32>
    %55 = vector.shape_cast %54 : vector<4x32xf32> to vector<4x32x1xf32>
    %cst_16 = arith.constant 9.99999974E-6 : f32
    %56 = vector.broadcast %cst_16 : f32 to vector<4x32x1xf32>
    %57 = arith.addf %55, %56 : vector<4x32x1xf32>
    %58 = tpu.reciprocal %57 {approx = true} : vector<4x32x1xf32> -> vector<4x32x1xf32>
    %59 = vector.broadcast %58 : vector<4x32x1xf32> to vector<4x32x32xf32>
    %60 = arith.mulf %53, %59 : vector<4x32x32xf32>
    %61 = arith.truncf %60 : vector<4x32x32xf32> to vector<4x32x32xbf16>
    %62 = vector.extract_strided_slice %12 {offsets = [0, 0], sizes = [32, 8], strides = [1, 1]} : vector<32x32xf32> to vector<32x8xf32>
    %63 = arith.truncf %62 : vector<32x8xf32> to vector<32x8xbf16>
    %64 = vector.extract_strided_slice %61 {offsets = [0, 0, 0], sizes = [1, 32, 32], strides = [1, 1, 1]} : vector<4x32x32xbf16> to vector<1x32x32xbf16>
    %65 = vector.shape_cast %64 : vector<1x32x32xbf16> to vector<32x32xbf16>
    %cst_17 = arith.constant dense<0.000000e+00> : vector<32x8xf32>
    %66 = tpu.matmul %65, %63, %cst_17 {dimension_numbers = #tpu.dot_dimension_numbers<[1], [0], [0], [1], [0, 0, 1, 1], [], []>} : vector<32x32xbf16>, vector<32x8xbf16>, vector<32x8xf32> -> vector<32x8xf32>
    %c0_18 = arith.constant 0 : index
    %c0_19 = arith.constant 0 : index
    %c0_20 = arith.constant 0 : index
    %67 = vector.load %arg4[%c0_18, %c0_19, %c0_20] : memref<4x8x32xf32, #tpu.memory_space<vmem>>, vector<1x8x32xf32>
    %68 = vector.shape_cast %67 : vector<1x8x32xf32> to vector<8x32xf32>
    %69 = arith.truncf %68 : vector<8x32xf32> to vector<8x32xbf16>
    %70 = arith.truncf %66 : vector<32x8xf32> to vector<32x8xbf16>
    %cst_21 = arith.constant dense<0.000000e+00> : vector<32x32xf32>
    %71 = tpu.matmul %70, %69, %cst_21 {dimension_numbers = #tpu.dot_dimension_numbers<[1], [0], [0], [1], [0, 0, 1, 1], [], []>} : vector<32x8xbf16>, vector<8x32xbf16>, vector<32x32xf32> -> vector<32x32xf32>
    %72 = vector.extract_strided_slice %12 {offsets = [0, 8], sizes = [32, 8], strides = [1, 1]} : vector<32x32xf32> to vector<32x8xf32>
    %73 = arith.truncf %72 : vector<32x8xf32> to vector<32x8xbf16>
    %74 = vector.extract_strided_slice %61 {offsets = [1, 0, 0], sizes = [1, 32, 32], strides = [1, 1, 1]} : vector<4x32x32xbf16> to vector<1x32x32xbf16>
    %75 = vector.shape_cast %74 : vector<1x32x32xbf16> to vector<32x32xbf16>
    %cst_22 = arith.constant dense<0.000000e+00> : vector<32x8xf32>
    %76 = tpu.matmul %75, %73, %cst_22 {dimension_numbers = #tpu.dot_dimension_numbers<[1], [0], [0], [1], [0, 0, 1, 1], [], []>} : vector<32x32xbf16>, vector<32x8xbf16>, vector<32x8xf32> -> vector<32x8xf32>
    %c1_23 = arith.constant 1 : index
    %c0_24 = arith.constant 0 : index
    %c0_25 = arith.constant 0 : index
    %77 = vector.load %arg4[%c1_23, %c0_24, %c0_25] : memref<4x8x32xf32, #tpu.memory_space<vmem>>, vector<1x8x32xf32>
    %78 = vector.shape_cast %77 : vector<1x8x32xf32> to vector<8x32xf32>
    %79 = arith.truncf %78 : vector<8x32xf32> to vector<8x32xbf16>
    %80 = arith.truncf %76 : vector<32x8xf32> to vector<32x8xbf16>
    %cst_26 = arith.constant dense<0.000000e+00> : vector<32x32xf32>
    %81 = tpu.matmul %80, %79, %cst_26 {dimension_numbers = #tpu.dot_dimension_numbers<[1], [0], [0], [1], [0, 0, 1, 1], [], []>} : vector<32x8xbf16>, vector<8x32xbf16>, vector<32x32xf32> -> vector<32x32xf32>
    %82 = arith.addf %71, %81 : vector<32x32xf32>
    %83 = vector.extract_strided_slice %12 {offsets = [0, 16], sizes = [32, 8], strides = [1, 1]} : vector<32x32xf32> to vector<32x8xf32>
    %84 = arith.truncf %83 : vector<32x8xf32> to vector<32x8xbf16>
    %85 = vector.extract_strided_slice %61 {offsets = [2, 0, 0], sizes = [1, 32, 32], strides = [1, 1, 1]} : vector<4x32x32xbf16> to vector<1x32x32xbf16>
    %86 = vector.shape_cast %85 : vector<1x32x32xbf16> to vector<32x32xbf16>
    %cst_27 = arith.constant dense<0.000000e+00> : vector<32x8xf32>
    %87 = tpu.matmul %86, %84, %cst_27 {dimension_numbers = #tpu.dot_dimension_numbers<[1], [0], [0], [1], [0, 0, 1, 1], [], []>} : vector<32x32xbf16>, vector<32x8xbf16>, vector<32x8xf32> -> vector<32x8xf32>
    %c2 = arith.constant 2 : index
    %c0_28 = arith.constant 0 : index
    %c0_29 = arith.constant 0 : index
    %88 = vector.load %arg4[%c2, %c0_28, %c0_29] : memref<4x8x32xf32, #tpu.memory_space<vmem>>, vector<1x8x32xf32>
    %89 = vector.shape_cast %88 : vector<1x8x32xf32> to vector<8x32xf32>
    %90 = arith.truncf %89 : vector<8x32xf32> to vector<8x32xbf16>
    %91 = arith.truncf %87 : vector<32x8xf32> to vector<32x8xbf16>
    %cst_30 = arith.constant dense<0.000000e+00> : vector<32x32xf32>
    %92 = tpu.matmul %91, %90, %cst_30 {dimension_numbers = #tpu.dot_dimension_numbers<[1], [0], [0], [1], [0, 0, 1, 1], [], []>} : vector<32x8xbf16>, vector<8x32xbf16>, vector<32x32xf32> -> vector<32x32xf32>
    %93 = arith.addf %82, %92 : vector<32x32xf32>
    %94 = vector.extract_strided_slice %12 {offsets = [0, 24], sizes = [32, 8], strides = [1, 1]} : vector<32x32xf32> to vector<32x8xf32>
    %95 = arith.truncf %94 : vector<32x8xf32> to vector<32x8xbf16>
    %96 = vector.extract_strided_slice %61 {offsets = [3, 0, 0], sizes = [1, 32, 32], strides = [1, 1, 1]} : vector<4x32x32xbf16> to vector<1x32x32xbf16>
    %97 = vector.shape_cast %96 : vector<1x32x32xbf16> to vector<32x32xbf16>
    %cst_31 = arith.constant dense<0.000000e+00> : vector<32x8xf32>
    %98 = tpu.matmul %97, %95, %cst_31 {dimension_numbers = #tpu.dot_dimension_numbers<[1], [0], [0], [1], [0, 0, 1, 1], [], []>} : vector<32x32xbf16>, vector<32x8xbf16>, vector<32x8xf32> -> vector<32x8xf32>
    %c3 = arith.constant 3 : index
    %c0_32 = arith.constant 0 : index
    %c0_33 = arith.constant 0 : index
    %99 = vector.load %arg4[%c3, %c0_32, %c0_33] : memref<4x8x32xf32, #tpu.memory_space<vmem>>, vector<1x8x32xf32>
    %100 = vector.shape_cast %99 : vector<1x8x32xf32> to vector<8x32xf32>
    %101 = arith.truncf %100 : vector<8x32xf32> to vector<8x32xbf16>
    %102 = arith.truncf %98 : vector<32x8xf32> to vector<32x8xbf16>
    %cst_34 = arith.constant dense<0.000000e+00> : vector<32x32xf32>
    %103 = tpu.matmul %102, %101, %cst_34 {dimension_numbers = #tpu.dot_dimension_numbers<[1], [0], [0], [1], [0, 0, 1, 1], [], []>} : vector<32x8xbf16>, vector<8x32xbf16>, vector<32x32xf32> -> vector<32x32xf32>
    %104 = arith.addf %93, %103 : vector<32x32xf32>
    %c0_35 = arith.constant 0 : index
    %c0_36 = arith.constant 0 : index
    %105 = vector.load %arg6[%c0_35, %c0_36] : memref<1x32xf32, #tpu.memory_space<vmem>>, vector<1x32xf32>
    %106 = vector.broadcast %105 : vector<1x32xf32> to vector<32x32xf32>
    %107 = arith.addf %104, %106 : vector<32x32xf32>
    %cst_37 = arith.constant 0.000000e+00 : f32
    %108 = vector.broadcast %cst_37 : f32 to vector<32x32xf32>
    %109 = arith.maximumf %107, %108 : vector<32x32xf32>
    %110 = vector.broadcast %cst_37 : f32 to vector<32x32xf32>
    %111 = arith.subf %107, %110 : vector<32x32xf32>
    %112 = arith.cmpf one, %111, %111 : vector<32x32xf32>
    %113 = vector.broadcast %cst_37 : f32 to vector<32x32xf32>
    %114 = arith.addf %107, %113 : vector<32x32xf32>
    %115 = math.absf %111 : vector<32x32xf32>
    %cst_38 = arith.constant 0.000000e+00 : f32
    %116 = vector.broadcast %cst_38 : f32 to vector<32x32xf32>
    %117 = arith.subf %116, %115 : vector<32x32xf32>
    %118 = math.exp %117 : vector<32x32xf32>
    %119 = math.log1p %118 : vector<32x32xf32>
    %120 = arith.addf %109, %119 : vector<32x32xf32>
    %121 = arith.select %112, %114, %120 : vector<32x32xi1>, vector<32x32xf32>
    %122 = math.tanh %121 : vector<32x32xf32>
    %123 = arith.mulf %107, %122 : vector<32x32xf32>
    %c0_39 = arith.constant 0 : index
    %c0_40 = arith.constant 0 : index
    %124 = vector.load %arg7[%c0_39, %c0_40] : memref<32x32xf32, #tpu.memory_space<vmem>>, vector<32x32xf32>
    tpu.vector_store %arg7[%c0_39, %c0_40], %123 {strides = array<i32>} : memref<32x32xf32, #tpu.memory_space<vmem>>, vector<32x32xf32>,
    return
  }
  func.func @transform_0(%arg0: i32) -> (i32, i32) {
    %c0_i32 = arith.constant 0 : i32
    %c0_i32_0 = arith.constant 0 : i32
    %c0_i32_1 = arith.constant 0 : i32
    return %c0_i32, %c0_i32_0 : i32, i32
  }
  func.func @transform_1(%arg0: i32) -> (i32, i32, i32) {
    %c0_i32 = arith.constant 0 : i32
    %c0_i32_0 = arith.constant 0 : i32
    %c0_i32_1 = arith.constant 0 : i32
    %c0_i32_2 = arith.constant 0 : i32
    return %c0_i32, %c0_i32_0, %c0_i32_1 : i32, i32, i32
  }
  func.func @transform_2(%arg0: i32) -> (i32, i32) {
    %c0_i32 = arith.constant 0 : i32
    %c0_i32_0 = arith.constant 0 : i32
    %c0_i32_1 = arith.constant 0 : i32
    return %c0_i32, %c0_i32_0 : i32, i32
  }
  func.func @transform_3(%arg0: i32) -> (i32, i32, i32) {
    %c0_i32 = arith.constant 0 : i32
    %c0_i32_0 = arith.constant 0 : i32
    %c0_i32_1 = arith.constant 0 : i32
    %c0_i32_2 = arith.constant 0 : i32
    return %c0_i32, %c0_i32_0, %c0_i32_1 : i32, i32, i32
  }
  func.func @transform_4(%arg0: i32) -> (i32, i32) {
    %c0_i32 = arith.constant 0 : i32
    %c0_i32_0 = arith.constant 0 : i32
    %c0_i32_1 = arith.constant 0 : i32
    return %c0_i32, %c0_i32_0 : i32, i32
  }
  func.func @transform_5(%arg0: i32) -> (i32, i32) {
    %c0_i32 = arith.constant 0 : i32
    %c0_i32_0 = arith.constant 0 : i32
    %c0_i32_1 = arith.constant 0 : i32
    return %c0_i32, %c0_i32_0 : i32, i32
  }
  func.func @transform_6(%arg0: i32) -> (i32, i32) {
    %c0_i32 = arith.constant 0 : i32
    %c0_i32_0 = arith.constant 0 : i32
    %c0_i32_1 = arith.constant 0 : i32
    return %c0_i32, %c0_i32_0 : i32, i32
  }
}

</mosaic_0001>

<llo_original>
// kernel: tpu_custom_call.1
$region0: #{tpu_custom_call.1}
  #allocation0 [shape = 'u32[]', space=smem, size = 0x4, offset = 0x4, fixed_abs, tag = 'smem constant byte address 0x4 - core index']
  #allocation1 [shape = 'u32[72,128]{1,0:T(1,128)}', space=vmem, size = 0x9000, scoped, tag = 'internal scratch']
  %s0 = inlined_call_operand.hbm [shape: bf16[32,32], index: 0, kind: input, shape index: {}]
  %s1 = inlined_call_operand.hbm [shape: f32[2,32,32], index: 1, kind: input, shape index: {}]
  %s2 = inlined_call_operand.hbm [shape: bf16[32,96], index: 2, kind: input, shape index: {}]
  %s3 = inlined_call_operand.hbm [shape: f32[4,8,32], index: 3, kind: input, shape index: {}]
  %s4 = inlined_call_operand.vmem [shape: f32[1,96], index: 4, kind: input, shape index: {}]
  %s5 = inlined_call_operand.vmem [shape: f32[1,32], index: 5, kind: input, shape index: {}]
  %s6 = inlined_call_operand.hbm [shape: f32[32,32], index: 6, kind: output, shape index: {}]
  %s7 = sld [smem:[#allocation0]]
  $region50: #{tpu_custom_call.1} parent=0
    _
  %s9 = ssub.s32 1, %s7
  %s10 = scalar_select 0, %s9, %s7
  $region1: #{tpu_custom_call.1} parent=0
    #allocation2 [shape = 'u8[8192]{0}', space=vmem, size = 0x2000, scoped, tag = 'input window, operand 0, single buffered']
    #allocation3 [shape = 's32[1]{0}', space=sflag, size = 0x4, scoped, tag = 'scoped memory for tpu_custom_call.1']
    #allocation4 [shape = 's32[1]{0}', space=sflag, size = 0x4, scoped, tag = 'scoped memory for tpu_custom_call.1']
    #allocation5 [shape = 'u8[32768]{0}', space=vmem, size = 0x8000, scoped, tag = 'input window, operand 1, single buffered']
    #allocation6 [shape = 's32[1]{0}', space=sflag, size = 0x4, scoped, tag = 'scoped memory for tpu_custom_call.1']
    #allocation7 [shape = 'u8[8192]{0}', space=vmem, size = 0x2000, scoped, tag = 'input window, operand 2, single buffered']
    #allocation8 [shape = 'u8[16384]{0}', space=vmem, size = 0x4000, scoped, tag = 'input window, operand 3, single buffered']
    #allocation9 [shape = 's32[1]{0}', space=sflag, size = 0x4, scoped, tag = 'scoped memory for tpu_custom_call.1']
    #allocation10 [shape = 'u8[16384]{0}', space=vmem, size = 0x4000, scoped, tag = 'output window, operand 0, single buffered']
    %11 = vsyncpa [#allocation3], 0
    %12 = vsyncpa [#allocation6], 0
    %13 = vsyncpa [#allocation9], 0
    %14 = vsyncpa [#allocation4], 0
    // Predicated region
    $region2: #{tpu_custom_call.1} parent=1 // pred_check
      _
    $region3: #{tpu_custom_call.1} parent=1 // pred_check_branch
      %16 = sbr.rel (0) target = $region5
    $region4: #{tpu_custom_call.1} parent=1 // pred_region
      %18 = vsyncadd [#allocation3], 0
      %s19 = sshll.u32 %s0, 4
      %s20 = int_to_ptr.hbm [resolvable:$true] %s19
      %s21 = sshll.u32 [#allocation2], 4
      %s22 = int_to_ptr.vmem [resolvable:$true] %s21
      %27 = dma.hbm_to_vmem [thread:$0]  %s20, 256, %s22, [#allocation3], 64, 64, 4
    $region5: #{tpu_custom_call.1} parent=1 // pred_fallthru
      _
    // Predicated region
    $region6: #{tpu_custom_call.1} parent=1 // pred_check
      _
    $region7: #{tpu_custom_call.1} parent=1 // pred_check_branch
      %29 = sbr.rel (0) target = $region9
    $region8: #{tpu_custom_call.1} parent=1 // pred_region
      %31 = vsyncadd [#allocation6], 0
      %s32 = sshll.u32 %s1, 4
      %s33 = int_to_ptr.hbm [resolvable:$true] %s32
      %s34 = sshll.u32 [#allocation5], 4
      %s35 = int_to_ptr.vmem [resolvable:$true] %s34
      %40 = dma.hbm_to_vmem [thread:$0]  %s33, 1024, %s35, [#allocation6], 128, 128, 8
    $region9: #{tpu_custom_call.1} parent=1 // pred_fallthru
      _
    // Predicated region
    $region10: #{tpu_custom_call.1} parent=1 // pred_check
      _
    $region11: #{tpu_custom_call.1} parent=1 // pred_check_branch
      %42 = sbr.rel (0) target = $region13
    $region12: #{tpu_custom_call.1} parent=1 // pred_region
      %44 = vsyncadd [#allocation6], 0
      %s45 = sshll.u32 %s2, 4
      %s46 = int_to_ptr.hbm [resolvable:$true] %s45
      %s47 = sshll.u32 [#allocation7], 4
      %s48 = int_to_ptr.vmem [resolvable:$true] %s47
      %53 = dma.hbm_to_vmem [thread:$0]  %s46, 256, %s48, [#allocation6], 64, 64, 4
    $region13: #{tpu_custom_call.1} parent=1 // pred_fallthru
      _
    // Predicated region
    $region14: #{tpu_custom_call.1} parent=1 // pred_check
      _
    $region15: #{tpu_custom_call.1} parent=1 // pred_check_branch
      %55 = sbr.rel (0) target = $region17
    $region16: #{tpu_custom_call.1} parent=1 // pred_region
      %57 = vsyncadd [#allocation9], 0
      %s58 = sshll.u32 %s3, 4
      %s59 = int_to_ptr.hbm [resolvable:$true] %s58
      %s60 = sshll.u32 [#allocation8], 4
      %s61 = int_to_ptr.vmem [resolvable:$true] %s60
      %66 = dma.hbm_to_vmem [thread:$0]  %s59, 512, %s61, [#allocation9], 128, 128, 8
    $region17: #{tpu_custom_call.1} parent=1 // pred_fallthru
      _
    // Predicated region
    $region18: #{tpu_custom_call.1} parent=1 // pred_check
      _
    $region19: #{tpu_custom_call.1} parent=1 // pred_check_branch
      %68 = sbr.rel (0) target = $region21
    $region20: #{tpu_custom_call.1} parent=1 // pred_region
      _
    $region21: #{tpu_custom_call.1} parent=1 // pred_fallthru
      _
    // Predicated region
    $region22: #{tpu_custom_call.1} parent=1 // pred_check
      _
    $region23: #{tpu_custom_call.1} parent=1 // pred_check_branch
      %70 = sbr.rel (0) target = $region25
    $region24: #{tpu_custom_call.1} parent=1 // pred_region
      _
    $region25: #{tpu_custom_call.1} parent=1 // pred_fallthru
      _
    // Predicated region
    $region26: #{tpu_custom_call.1} parent=1 // pred_check
      _
    $region27: #{tpu_custom_call.1} parent=1 // pred_check_branch
      %72 = sbr.rel (0) target = $region29
    $region28: #{tpu_custom_call.1} parent=1 // pred_region
      %74 = dma.done [#allocation3], 256
    $region29: #{tpu_custom_call.1} parent=1 // pred_fallthru
      _
    // Predicated region
    $region30: #{tpu_custom_call.1} parent=1 // pred_check
      _
    $region31: #{tpu_custom_call.1} parent=1 // pred_check_branch
      %76 = sbr.rel (0) target = $region33
    $region32: #{tpu_custom_call.1} parent=1 // pred_region
      %78 = dma.done [#allocation6], 1024
    $region33: #{tpu_custom_call.1} parent=1 // pred_fallthru
      _
    // Predicated region
    $region34: #{tpu_custom_call.1} parent=1 // pred_check
      _
    $region35: #{tpu_custom_call.1} parent=1 // pred_check_branch
      %80 = sbr.rel (0) target = $region37
    $region36: #{tpu_custom_call.1} parent=1 // pred_region
      %82 = dma.done [#allocation6], 256
    $region37: #{tpu_custom_call.1} parent=1 // pred_fallthru
      _
    // Predicated region
    $region38: #{tpu_custom_call.1} parent=1 // pred_check
      _
    $region39: #{tpu_custom_call.1} parent=1 // pred_check_branch
      %84 = sbr.rel (0) target = $region41
    $region40: #{tpu_custom_call.1} parent=1 // pred_region
      %86 = dma.done [#allocation9], 512
    $region41: #{tpu_custom_call.1} parent=1 // pred_fallthru
      _
    %v88 = vld [vmem:[#allocation2] sm:$0xf]
    %v89 = vld [vmem:[#allocation2 + $0x4] sm:$0xf]
    %v90 = vld [vmem:[#allocation2 + $0x8] sm:$0xf]
    %v91 = vld [vmem:[#allocation2 + $0xc] sm:$0xf]
    %v92 = vld [vmem:[#allocation5] sm:$0xff]
    %v93 = vld [vmem:[#allocation5 + $0x8] sm:$0xff]
    %v94 = vld [vmem:[#allocation5 + $0x10] sm:$0xff]
    %v95 = vld [vmem:[#allocation5 + $0x18] sm:$0xff]
    %s96 = scalar_lea.vmem [#allocation5], 32
    %v97 = vld [vmem:[%s96] sm:$0xff]
    %v98 = vld [vmem:[%s96 + $0x8] sm:$0xff]
    %v99 = vld [vmem:[%s96 + $0x10] sm:$0xff]
    %v100 = vld [vmem:[%s96 + $0x18] sm:$0xff]
    %v101 = vld [vmem:[#allocation7] sm:$0xf]
    %v102 = vld [vmem:[#allocation7 + $0x4] sm:$0xf]
    %v103 = vld [vmem:[#allocation7 + $0x8] sm:$0xf]
    %v104 = vld [vmem:[#allocation7 + $0xc] sm:$0xf]
    %v105 = vld [vmem:[%s4] sm:$0x1]
    %v107 = vperm.slane %v105, 0
    %v113 = vunpack.c.l.b16 %v88
    %v114 = vunpack.c.l.b16 %v89
    %v115 = vunpack.c.l.b16 %v90
    %v116 = vunpack.c.l.b16 %v91
    %v117 = vpack.c.b16 %v114, %v113
    %v118 = vpack.c.b16 %v116, %v115
    %v123 = vunpack.c.l.b16 %v101
    %v124 = vunpack.c.l.b16 %v102
    %v125 = vunpack.c.l.b16 %v103
    %v126 = vunpack.c.l.b16 %v104
    %v127 = vpack.c.b16 %v124, %v123
    %v128 = vpack.c.b16 %v126, %v125
    %vm131 = vcmask 261120
    %v133 = vsel %vm131, %v117, 0
    %v136 = vsel %vm131, %v118, 0
    %138 = vmatpush.bf16.msra.mxu0 0
    %139 = vmatpush.bf16.msra.mxu0 0
    %140 = vmatpush.bf16.msra.mxu0 0
    %141 = vmatpush.bf16.msra.mxu0 0
    %142 = vmatpush.bf16.msra.mxu0 0
    %143 = vmatpush.bf16.msra.mxu0 0
    %144 = vmatpush.bf16.msra.mxu0 %v128
    %145 = vmatpush.bf16.msra.mxu0 %v127
    %146 = vmatmul.bf16.gmra.mxu0 %v133
    %v147 = vpop.f32.mrf.mxu0
    %v148 = vadd.f32 %v107, %v147
    %v149 = vpop.f32.mrf.mxu0
    %v150 = vadd.f32 %v107, %v149
    %151 = vmatmul.bf16.gmra.mxu0 %v136
    %v152 = vpop.f32.mrf.mxu0
    %v153 = vadd.f32 %v107, %v152
    %v154 = vpop.f32.mrf.mxu0
    %v155 = vadd.f32 %v107, %v154
    %156 = vdwg.mxu0
    %161 = vrot.lane.b32.xlu0 %v148, 120
    %v162 = vpop.permute.xlu0 %161
    %163 = vrot.lane.b32.xlu0 %v150, 120
    %v164 = vpop.permute.xlu0 %163
    %165 = vrot.lane.b32.xlu0 %v153, 120
    %v166 = vpop.permute.xlu0 %165
    %167 = vrot.lane.b32.xlu0 %v155, 120
    %v168 = vpop.permute.xlu0 %167
    %173 = vrot.lane.b32.xlu0 %v148, 112
    %v174 = vpop.permute.xlu0 %173
    %175 = vrot.lane.b32.xlu0 %v150, 112
    %v176 = vpop.permute.xlu0 %175
    %177 = vrot.lane.b32.xlu0 %v153, 112
    %v178 = vpop.permute.xlu0 %177
    %179 = vrot.lane.b32.xlu0 %v155, 112
    %v180 = vpop.permute.xlu0 %179
    %185 = vrot.lane.b32.xlu0 %v148, 104
    %v186 = vpop.permute.xlu0 %185
    %187 = vrot.lane.b32.xlu0 %v150, 104
    %v188 = vpop.permute.xlu0 %187
    %189 = vrot.lane.b32.xlu0 %v153, 104
    %v190 = vpop.permute.xlu0 %189
    %191 = vrot.lane.b32.xlu0 %v155, 104
    %v192 = vpop.permute.xlu0 %191
    %v197 = vpack.c.bf16 %v148, %v148
    %v198 = vpack.c.bf16 %v150, %v150
    %v199 = vpack.c.bf16 %v153, %v153
    %v200 = vpack.c.bf16 %v155, %v155
    %v201 = vpack.c.bf16 %v162, %v162
    %v202 = vpack.c.bf16 %v164, %v164
    %v203 = vpack.c.bf16 %v166, %v166
    %v204 = vpack.c.bf16 %v168, %v168
    %v205 = vpack.c.bf16 %v174, %v174
    %v206 = vpack.c.bf16 %v176, %v176
    %v207 = vpack.c.bf16 %v178, %v178
    %v208 = vpack.c.bf16 %v180, %v180
    %v209 = vpack.c.bf16 %v186, %v186
    %v210 = vpack.c.bf16 %v188, %v188
    %v211 = vpack.c.bf16 %v190, %v190
    %v212 = vpack.c.bf16 %v192, %v192
    %v217 = vunpack.c.l.b16 %v197
    %v218 = vunpack.c.l.b16 %v198
    %v219 = vunpack.c.l.b16 %v199
    %v220 = vunpack.c.l.b16 %v200
    %v221 = vpack.c.b16 %v218, %v217
    %v222 = vpack.c.b16 %v220, %v219
    %223 = vrot.lane.b32.xlu0 %v221, 96
    %v224 = vpop.permute.xlu0 %223
    %225 = vrot.lane.b32.xlu0 %v222, 96
    %v226 = vpop.permute.xlu0 %225
    %vm227 = vcmask 64512
    %v229 = vsel %vm227, %v221, 0
    %v232 = vsel %vm227, %v222, 0
    %v235 = vsel %vm227, %v224, 0
    %v238 = vsel %vm227, %v226, 0
    %240 = vmatpush.bf16.xpose.msra.mxu0 0
    %241 = vmatpush.bf16.xpose.msra.mxu0 0
    %242 = vmatpush.bf16.xpose.msra.mxu0 0
    %243 = vmatpush.bf16.xpose.msra.mxu0 0
    %244 = vmatpush.bf16.xpose.msra.mxu0 0
    %245 = vmatpush.bf16.xpose.msra.mxu0 0
    %246 = vmatpush.bf16.xpose.msra.mxu0 %v238
    %247 = vmatpush.bf16.xpose.msra.mxu0 %v235
    %248 = vmatmul.bf16.gmra.mxu0 %v229
    %v249 = vpop.f32.mrf.mxu0
    %v250 = vadd.f32 0.0, %v249
    %v251 = vpop.f32.mrf.mxu0
    %v252 = vadd.f32 0.0, %v251
    %253 = vmatmul.bf16.gmra.mxu0 %v232
    %v254 = vpop.f32.mrf.mxu0
    %v255 = vadd.f32 0.0, %v254
    %v256 = vpop.f32.mrf.mxu0
    %v257 = vadd.f32 0.0, %v256
    %258 = vdwg.mxu0
    %v263 = vunpack.c.l.b16 %v201
    %v264 = vunpack.c.l.b16 %v202
    %v265 = vunpack.c.l.b16 %v203
    %v266 = vunpack.c.l.b16 %v204
    %v267 = vpack.c.b16 %v264, %v263
    %v268 = vpack.c.b16 %v266, %v265
    %269 = vrot.lane.b32.xlu0 %v267, 96
    %v270 = vpop.permute.xlu0 %269
    %271 = vrot.lane.b32.xlu0 %v268, 96
    %v272 = vpop.permute.xlu0 %271
    %v274 = vsel %vm227, %v267, 0
    %v277 = vsel %vm227, %v268, 0
    %v280 = vsel %vm227, %v270, 0
    %v283 = vsel %vm227, %v272, 0
    %285 = vmatpush.bf16.xpose.msra.mxu0 0
    %286 = vmatpush.bf16.xpose.msra.mxu0 0
    %287 = vmatpush.bf16.xpose.msra.mxu0 0
    %288 = vmatpush.bf16.xpose.msra.mxu0 0
    %289 = vmatpush.bf16.xpose.msra.mxu0 0
    %290 = vmatpush.bf16.xpose.msra.mxu0 0
    %291 = vmatpush.bf16.xpose.msra.mxu0 %v283
    %292 = vmatpush.bf16.xpose.msra.mxu0 %v280
    %293 = vmatmul.bf16.gmra.mxu0 %v274
    %v294 = vpop.f32.mrf.mxu0
    %v295 = vadd.f32 0.0, %v294
    %v296 = vpop.f32.mrf.mxu0
    %v297 = vadd.f32 0.0, %v296
    %298 = vmatmul.bf16.gmra.mxu0 %v277
    %v299 = vpop.f32.mrf.mxu0
    %v300 = vadd.f32 0.0, %v299
    %v301 = vpop.f32.mrf.mxu0
    %v302 = vadd.f32 0.0, %v301
    %303 = vdwg.mxu0
    %v308 = vunpack.c.l.b16 %v205
    %v309 = vunpack.c.l.b16 %v206
    %v310 = vunpack.c.l.b16 %v207
    %v311 = vunpack.c.l.b16 %v208
    %v312 = vpack.c.b16 %v309, %v308
    %v313 = vpack.c.b16 %v311, %v310
    %314 = vrot.lane.b32.xlu0 %v312, 96
    %v315 = vpop.permute.xlu0 %314
    %316 = vrot.lane.b32.xlu0 %v313, 96
    %v317 = vpop.permute.xlu0 %316
    %v319 = vsel %vm227, %v312, 0
    %v322 = vsel %vm227, %v313, 0
    %v325 = vsel %vm227, %v315, 0
    %v328 = vsel %vm227, %v317, 0
    %330 = vmatpush.bf16.xpose.msra.mxu0 0
    %331 = vmatpush.bf16.xpose.msra.mxu0 0
    %332 = vmatpush.bf16.xpose.msra.mxu0 0
    %333 = vmatpush.bf16.xpose.msra.mxu0 0
    %334 = vmatpush.bf16.xpose.msra.mxu0 0
    %335 = vmatpush.bf16.xpose.msra.mxu0 0
    %336 = vmatpush.bf16.xpose.msra.mxu0 %v328
    %337 = vmatpush.bf16.xpose.msra.mxu0 %v325
    %338 = vmatmul.bf16.gmra.mxu0 %v319
    %v339 = vpop.f32.mrf.mxu0
    %v340 = vadd.f32 0.0, %v339
    %v341 = vpop.f32.mrf.mxu0
    %v342 = vadd.f32 0.0, %v341
    %343 = vmatmul.bf16.gmra.mxu0 %v322
    %v344 = vpop.f32.mrf.mxu0
    %v345 = vadd.f32 0.0, %v344
    %v346 = vpop.f32.mrf.mxu0
    %v347 = vadd.f32 0.0, %v346
    %348 = vdwg.mxu0
    %v353 = vunpack.c.l.b16 %v209
    %v354 = vunpack.c.l.b16 %v210
    %v355 = vunpack.c.l.b16 %v211
    %v356 = vunpack.c.l.b16 %v212
    %v357 = vpack.c.b16 %v354, %v353
    %v358 = vpack.c.b16 %v356, %v355
    %359 = vrot.lane.b32.xlu0 %v357, 96
    %v360 = vpop.permute.xlu0 %359
    %361 = vrot.lane.b32.xlu0 %v358, 96
    %v362 = vpop.permute.xlu0 %361
    %v364 = vsel %vm227, %v357, 0
    %v367 = vsel %vm227, %v358, 0
    %v370 = vsel %vm227, %v360, 0
    %v373 = vsel %vm227, %v362, 0
    %375 = vmatpush.bf16.xpose.msra.mxu0 0
    %376 = vmatpush.bf16.xpose.msra.mxu0 0
    %377 = vmatpush.bf16.xpose.msra.mxu0 0
    %378 = vmatpush.bf16.xpose.msra.mxu0 0
    %379 = vmatpush.bf16.xpose.msra.mxu0 0
    %380 = vmatpush.bf16.xpose.msra.mxu0 0
    %381 = vmatpush.bf16.xpose.msra.mxu0 %v373
    %382 = vmatpush.bf16.xpose.msra.mxu0 %v370
    %383 = vmatmul.bf16.gmra.mxu0 %v364
    %v384 = vpop.f32.mrf.mxu0
    %v385 = vadd.f32 0.0, %v384
    %v386 = vpop.f32.mrf.mxu0
    %v387 = vadd.f32 0.0, %v386
    %388 = vmatmul.bf16.gmra.mxu0 %v367
    %v389 = vpop.f32.mrf.mxu0
    %v390 = vadd.f32 0.0, %v389
    %v391 = vpop.f32.mrf.mxu0
    %v392 = vadd.f32 0.0, %v391
    %393 = vdwg.mxu0
    %vm394 = vcmp.eq.f32.partialorder %v92, 0.0
    %vm395 = vcmp.eq.f32.partialorder %v93, 0.0
    %vm396 = vcmp.eq.f32.partialorder %v94, 0.0
    %vm397 = vcmp.eq.f32.partialorder %v95, 0.0
    %v398 = vsel %vm394, 1, 0
    %v399 = vsel %vm395, 1, 0
    %v400 = vsel %vm396, 1, 0
    %v401 = vsel %vm397, 1, 0
    %vm402 = vcmp.eq.s32.totalorder %v398, 1
    %vm403 = vcmp.eq.s32.totalorder %v399, 1
    %vm404 = vcmp.eq.s32.totalorder %v400, 1
    %vm405 = vcmp.eq.s32.totalorder %v401, 1
    %v406 = vsel %vm402, -1e+12, %v250
    %v407 = vsel %vm403, -1e+12, %v252
    %v408 = vsel %vm404, -1e+12, %v255
    %v409 = vsel %vm405, -1e+12, %v257
    %v410 = vsel %vm402, -1e+12, %v295
    %v411 = vsel %vm403, -1e+12, %v297
    %v412 = vsel %vm404, -1e+12, %v300
    %v413 = vsel %vm405, -1e+12, %v302
    %v414 = vsel %vm402, -1e+12, %v340
    %v415 = vsel %vm403, -1e+12, %v342
    %v416 = vsel %vm404, -1e+12, %v345
    %v417 = vsel %vm405, -1e+12, %v347
    %v418 = vsel %vm402, -1e+12, %v385
    %v419 = vsel %vm403, -1e+12, %v387
    %v420 = vsel %vm404, -1e+12, %v390
    %v421 = vsel %vm405, -1e+12, %v392
    %v422 = vsel %vm131, %v406, -inf
    %423 = vmax.xlane.f32.xlu0 %v422
    %v424 = vpop.xlane.xlu0 %423
    %v425 = vsel %vm131, %v407, -inf
    %426 = vmax.xlane.f32.xlu0 %v425
    %v427 = vpop.xlane.xlu0 %426
    %v428 = vsel %vm131, %v408, -inf
    %429 = vmax.xlane.f32.xlu0 %v428
    %v430 = vpop.xlane.xlu0 %429
    %v431 = vsel %vm131, %v409, -inf
    %432 = vmax.xlane.f32.xlu0 %v431
    %v433 = vpop.xlane.xlu0 %432
    %v434 = vsel %vm131, %v410, -inf
    %435 = vmax.xlane.f32.xlu0 %v434
    %v436 = vpop.xlane.xlu0 %435
    %v437 = vsel %vm131, %v411, -inf
    %438 = vmax.xlane.f32.xlu0 %v437
    %v439 = vpop.xlane.xlu0 %438
    %v440 = vsel %vm131, %v412, -inf
    %441 = vmax.xlane.f32.xlu0 %v440
    %v442 = vpop.xlane.xlu0 %441
    %v443 = vsel %vm131, %v413, -inf
    %444 = vmax.xlane.f32.xlu0 %v443
    %v445 = vpop.xlane.xlu0 %444
    %v446 = vsel %vm131, %v414, -inf
    %447 = vmax.xlane.f32.xlu0 %v446
    %v448 = vpop.xlane.xlu0 %447
    %v449 = vsel %vm131, %v415, -inf
    %450 = vmax.xlane.f32.xlu0 %v449
    %v451 = vpop.xlane.xlu0 %450
    %v452 = vsel %vm131, %v416, -inf
    %453 = vmax.xlane.f32.xlu0 %v452
    %v454 = vpop.xlane.xlu0 %453
    %v455 = vsel %vm131, %v417, -inf
    %456 = vmax.xlane.f32.xlu0 %v455
    %v457 = vpop.xlane.xlu0 %456
    %v458 = vsel %vm131, %v418, -inf
    %459 = vmax.xlane.f32.xlu0 %v458
    %v460 = vpop.xlane.xlu0 %459
    %v461 = vsel %vm131, %v419, -inf
    %462 = vmax.xlane.f32.xlu0 %v461
    %v463 = vpop.xlane.xlu0 %462
    %v464 = vsel %vm131, %v420, -inf
    %465 = vmax.xlane.f32.xlu0 %v464
    %v466 = vpop.xlane.xlu0 %465
    %v467 = vsel %vm131, %v421, -inf
    %468 = vmax.xlane.f32.xlu0 %v467
    %v469 = vpop.xlane.xlu0 %468
    %v470 = vsub.f32 %v406, %v424
    %v471 = vsub.f32 %v407, %v427
    %v472 = vsub.f32 %v408, %v430
    %v473 = vsub.f32 %v409, %v433
    %v474 = vsub.f32 %v410, %v436
    %v475 = vsub.f32 %v411, %v439
    %v476 = vsub.f32 %v412, %v442
    %v477 = vsub.f32 %v413, %v445
    %v478 = vsub.f32 %v414, %v448
    %v479 = vsub.f32 %v415, %v451
    %v480 = vsub.f32 %v416, %v454
    %v481 = vsub.f32 %v417, %v457
    %v482 = vsub.f32 %v418, %v460
    %v483 = vsub.f32 %v419, %v463
    %v484 = vsub.f32 %v420, %v466
    %v485 = vsub.f32 %v421, %v469
    %v486 = vmul.f32 %v470, 1.442695
    %v487 = vpow.pop %v486
    %v488 = vmul.f32 %v471, 1.442695
    %v489 = vpow.pop %v488
    %v490 = vmul.f32 %v472, 1.442695
    %v491 = vpow.pop %v490
    %v492 = vmul.f32 %v473, 1.442695
    %v493 = vpow.pop %v492
    %v494 = vmul.f32 %v474, 1.442695
    %v495 = vpow.pop %v494
    %v496 = vmul.f32 %v475, 1.442695
    %v497 = vpow.pop %v496
    %v498 = vmul.f32 %v476, 1.442695
    %v499 = vpow.pop %v498
    %v500 = vmul.f32 %v477, 1.442695
    %v501 = vpow.pop %v500
    %v502 = vmul.f32 %v478, 1.442695
    %v503 = vpow.pop %v502
    %v504 = vmul.f32 %v479, 1.442695
    %v505 = vpow.pop %v504
    %v506 = vmul.f32 %v480, 1.442695
    %v507 = vpow.pop %v506
    %v508 = vmul.f32 %v481, 1.442695
    %v509 = vpow.pop %v508
    %v510 = vmul.f32 %v482, 1.442695
    %v511 = vpow.pop %v510
    %v512 = vmul.f32 %v483, 1.442695
    %v513 = vpow.pop %v512
    %v514 = vmul.f32 %v484, 1.442695
    %v515 = vpow.pop %v514
    %v516 = vmul.f32 %v485, 1.442695
    %v517 = vpow.pop %v516
    %v518 = vsel %vm131, %v487, 0.0
    %519 = vadd.xlane.f32.xlu0 %v518
    %v520 = vpop.xlane.xlu0 %519
    %v521 = vsel %vm131, %v489, 0.0
    %522 = vadd.xlane.f32.xlu0 %v521
    %v523 = vpop.xlane.xlu0 %522
    %v524 = vsel %vm131, %v491, 0.0
    %525 = vadd.xlane.f32.xlu0 %v524
    %v526 = vpop.xlane.xlu0 %525
    %v527 = vsel %vm131, %v493, 0.0
    %528 = vadd.xlane.f32.xlu0 %v527
    %v529 = vpop.xlane.xlu0 %528
    %v530 = vsel %vm131, %v495, 0.0
    %531 = vadd.xlane.f32.xlu0 %v530
    %v532 = vpop.xlane.xlu0 %531
    %v533 = vsel %vm131, %v497, 0.0
    %534 = vadd.xlane.f32.xlu0 %v533
    %v535 = vpop.xlane.xlu0 %534
    %v536 = vsel %vm131, %v499, 0.0
    %537 = vadd.xlane.f32.xlu0 %v536
    %v538 = vpop.xlane.xlu0 %537
    %v539 = vsel %vm131, %v501, 0.0
    %540 = vadd.xlane.f32.xlu0 %v539
    %v541 = vpop.xlane.xlu0 %540
    %v542 = vsel %vm131, %v503, 0.0
    %543 = vadd.xlane.f32.xlu0 %v542
    %v544 = vpop.xlane.xlu0 %543
    %v545 = vsel %vm131, %v505, 0.0
    %546 = vadd.xlane.f32.xlu0 %v545
    %v547 = vpop.xlane.xlu0 %546
    %v548 = vsel %vm131, %v507, 0.0
    %549 = vadd.xlane.f32.xlu0 %v548
    %v550 = vpop.xlane.xlu0 %549
    %v551 = vsel %vm131, %v509, 0.0
    %552 = vadd.xlane.f32.xlu0 %v551
    %v553 = vpop.xlane.xlu0 %552
    %v554 = vsel %vm131, %v511, 0.0
    %555 = vadd.xlane.f32.xlu0 %v554
    %v556 = vpop.xlane.xlu0 %555
    %v557 = vsel %vm131, %v513, 0.0
    %558 = vadd.xlane.f32.xlu0 %v557
    %v559 = vpop.xlane.xlu0 %558
    %v560 = vsel %vm131, %v515, 0.0
    %561 = vadd.xlane.f32.xlu0 %v560
    %v562 = vpop.xlane.xlu0 %561
    %v563 = vsel %vm131, %v517, 0.0
    %564 = vadd.xlane.f32.xlu0 %v563
    %v565 = vpop.xlane.xlu0 %564
    %v566 = vrcp.pop %v520
    %v567 = vrcp.pop %v523
    %v568 = vrcp.pop %v526
    %v569 = vrcp.pop %v529
    %v570 = vrcp.pop %v532
    %v571 = vrcp.pop %v535
    %v572 = vrcp.pop %v538
    %v573 = vrcp.pop %v541
    %v574 = vrcp.pop %v544
    %v575 = vrcp.pop %v547
    %v576 = vrcp.pop %v550
    %v577 = vrcp.pop %v553
    %v578 = vrcp.pop %v556
    %v579 = vrcp.pop %v559
    %v580 = vrcp.pop %v562
    %v581 = vrcp.pop %v565
    %v582 = vmul.f32 %v487, %v566
    %v583 = vmul.f32 %v489, %v567
    %v584 = vmul.f32 %v491, %v568
    %v585 = vmul.f32 %v493, %v569
    %v586 = vmul.f32 %v495, %v570
    %v587 = vmul.f32 %v497, %v571
    %v588 = vmul.f32 %v499, %v572
    %v589 = vmul.f32 %v501, %v573
    %v590 = vmul.f32 %v503, %v574
    %v591 = vmul.f32 %v505, %v575
    %v592 = vmul.f32 %v507, %v576
    %v593 = vmul.f32 %v509, %v577
    %v594 = vmul.f32 %v511, %v578
    %v595 = vmul.f32 %v513, %v579
    %v596 = vmul.f32 %v515, %v580
    %v597 = vmul.f32 %v517, %v581
    %v598 = vmul.f32 %v582, %v97
    %v599 = vmul.f32 %v583, %v98
    %v600 = vmul.f32 %v584, %v99
    %v601 = vmul.f32 %v585, %v100
    %v602 = vmul.f32 %v586, %v97
    %v603 = vmul.f32 %v587, %v98
    %v604 = vmul.f32 %v588, %v99
    %v605 = vmul.f32 %v589, %v100
    %v606 = vmul.f32 %v590, %v97
    %v607 = vmul.f32 %v591, %v98
    %v608 = vmul.f32 %v592, %v99
    %v609 = vmul.f32 %v593, %v100
    %v610 = vmul.f32 %v594, %v97
    %v611 = vmul.f32 %v595, %v98
    %v612 = vmul.f32 %v596, %v99
    %v613 = vmul.f32 %v597, %v100
    %v614 = vsel %vm131, %v598, 0.0
    %615 = vadd.xlane.f32.xlu0 %v614
    %v616 = vpop.xlane.xlu0 %615
    %v617 = vsel %vm131, %v599, 0.0
    %618 = vadd.xlane.f32.xlu0 %v617
    %v619 = vpop.xlane.xlu0 %618
    %v620 = vsel %vm131, %v600, 0.0
    %621 = vadd.xlane.f32.xlu0 %v620
    %v622 = vpop.xlane.xlu0 %621
    %v623 = vsel %vm131, %v601, 0.0
    %624 = vadd.xlane.f32.xlu0 %v623
    %v625 = vpop.xlane.xlu0 %624
    %v626 = vsel %vm131, %v602, 0.0
    %627 = vadd.xlane.f32.xlu0 %v626
    %v628 = vpop.xlane.xlu0 %627
    %v629 = vsel %vm131, %v603, 0.0
    %630 = vadd.xlane.f32.xlu0 %v629
    %v631 = vpop.xlane.xlu0 %630
    %v632 = vsel %vm131, %v604, 0.0
    %633 = vadd.xlane.f32.xlu0 %v632
    %v634 = vpop.xlane.xlu0 %633
    %v635 = vsel %vm131, %v605, 0.0
    %636 = vadd.xlane.f32.xlu0 %v635
    %v637 = vpop.xlane.xlu0 %636
    %v638 = vsel %vm131, %v606, 0.0
    %639 = vadd.xlane.f32.xlu0 %v638
    %v640 = vpop.xlane.xlu0 %639
    %v641 = vsel %vm131, %v607, 0.0
    %642 = vadd.xlane.f32.xlu0 %v641
    %v643 = vpop.xlane.xlu0 %642
    %v644 = vsel %vm131, %v608, 0.0
    %645 = vadd.xlane.f32.xlu0 %v644
    %v646 = vpop.xlane.xlu0 %645
    %v647 = vsel %vm131, %v609, 0.0
    %648 = vadd.xlane.f32.xlu0 %v647
    %v649 = vpop.xlane.xlu0 %648
    %v650 = vsel %vm131, %v610, 0.0
    %651 = vadd.xlane.f32.xlu0 %v650
    %v652 = vpop.xlane.xlu0 %651
    %v653 = vsel %vm131, %v611, 0.0
    %654 = vadd.xlane.f32.xlu0 %v653
    %v655 = vpop.xlane.xlu0 %654
    %v656 = vsel %vm131, %v612, 0.0
    %657 = vadd.xlane.f32.xlu0 %v656
    %v658 = vpop.xlane.xlu0 %657
    %v659 = vsel %vm131, %v613, 0.0
    %660 = vadd.xlane.f32.xlu0 %v659
    %v661 = vpop.xlane.xlu0 %660
    %v662 = vadd.f32 %v616, 1e-05
    %v663 = vadd.f32 %v619, 1e-05
    %v664 = vadd.f32 %v622, 1e-05
    %v665 = vadd.f32 %v625, 1e-05
    %v666 = vadd.f32 %v628, 1e-05
    %v667 = vadd.f32 %v631, 1e-05
    %v668 = vadd.f32 %v634, 1e-05
    %v669 = vadd.f32 %v637, 1e-05
    %v670 = vadd.f32 %v640, 1e-05
    %v671 = vadd.f32 %v643, 1e-05
    %v672 = vadd.f32 %v646, 1e-05
    %v673 = vadd.f32 %v649, 1e-05
    %v674 = vadd.f32 %v652, 1e-05
    %v675 = vadd.f32 %v655, 1e-05
    %v676 = vadd.f32 %v658, 1e-05
    %v677 = vadd.f32 %v661, 1e-05
    %v678 = vrcp.pop %v662
    %v679 = vrcp.pop %v663
    %v680 = vrcp.pop %v664
    %v681 = vrcp.pop %v665
    %v682 = vrcp.pop %v666
    %v683 = vrcp.pop %v667
    %v684 = vrcp.pop %v668
    %v685 = vrcp.pop %v669
    %v686 = vrcp.pop %v670
    %v687 = vrcp.pop %v671
    %v688 = vrcp.pop %v672
    %v689 = vrcp.pop %v673
    %v690 = vrcp.pop %v674
    %v691 = vrcp.pop %v675
    %v692 = vrcp.pop %v676
    %v693 = vrcp.pop %v677
    %v694 = vmul.f32 %v598, %v678
    %v695 = vmul.f32 %v599, %v679
    %v696 = vmul.f32 %v600, %v680
    %v697 = vmul.f32 %v601, %v681
    %v698 = vmul.f32 %v602, %v682
    %v699 = vmul.f32 %v603, %v683
    %v700 = vmul.f32 %v604, %v684
    %v701 = vmul.f32 %v605, %v685
    %v702 = vmul.f32 %v606, %v686
    %v703 = vmul.f32 %v607, %v687
    %v704 = vmul.f32 %v608, %v688
    %v705 = vmul.f32 %v609, %v689
    %v706 = vmul.f32 %v610, %v690
    %v707 = vmul.f32 %v611, %v691
    %v708 = vmul.f32 %v612, %v692
    %v709 = vmul.f32 %v613, %v693
    %v710 = vpack.c.bf16 %v694, %v694
    %v711 = vpack.c.bf16 %v695, %v695
    %v712 = vpack.c.bf16 %v696, %v696
    %v713 = vpack.c.bf16 %v697, %v697
    %v714 = vpack.c.bf16 %v698, %v698
    %v715 = vpack.c.bf16 %v699, %v699
    %v716 = vpack.c.bf16 %v700, %v700
    %v717 = vpack.c.bf16 %v701, %v701
    %v718 = vpack.c.bf16 %v702, %v702
    %v719 = vpack.c.bf16 %v703, %v703
    %v720 = vpack.c.bf16 %v704, %v704
    %v721 = vpack.c.bf16 %v705, %v705
    %v722 = vpack.c.bf16 %v706, %v706
    %v723 = vpack.c.bf16 %v707, %v707
    %v724 = vpack.c.bf16 %v708, %v708
    %v725 = vpack.c.bf16 %v709, %v709
    %v726 = vpack.c.bf16 %v150, %v148
    %v727 = vpack.c.bf16 %v155, %v153
    %v732 = vunpack.c.l.b16 %v710
    %v733 = vunpack.c.l.b16 %v711
    %v734 = vunpack.c.l.b16 %v712
    %v735 = vunpack.c.l.b16 %v713
    %v736 = vpack.c.b16 %v733, %v732
    %v737 = vpack.c.b16 %v735, %v734
    %740 = vrot.lane.b32.xlu0 %v726, 64
    %v741 = vpop.permute.xlu0 %740
    %742 = vrot.lane.b32.xlu0 %v727, 64
    %v743 = vpop.permute.xlu0 %742
    %v747 = vsel %vm131, %v736, 0
    %v750 = vsel %vm131, %v737, 0
    %752 = vmatpush.bf16.msra.mxu0 0
    %753 = vmatpush.bf16.msra.mxu0 0
    %754 = vmatpush.bf16.msra.mxu0 0
    %755 = vmatpush.bf16.msra.mxu0 0
    %756 = vmatpush.bf16.msra.mxu0 0
    %757 = vmatpush.bf16.msra.mxu0 0
    %758 = vmatpush.bf16.msra.mxu0 %v743
    %759 = vmatpush.bf16.msra.mxu0 %v741
    %760 = vmatmul.bf16.gmra.mxu0 %v747
    %v761 = vpop.f32.mrf.mxu0
    %v762 = vadd.f32 0.0, %v761
    %v763 = vpop.f32.mrf.mxu0
    %v764 = vadd.f32 0.0, %v763
    %765 = vmatmul.bf16.gmra.mxu0 %v750
    %v766 = vpop.f32.mrf.mxu0
    %v767 = vadd.f32 0.0, %v766
    %v768 = vpop.f32.mrf.mxu0
    %v769 = vadd.f32 0.0, %v768
    %770 = vdwg.mxu0
    %v771 = vld [vmem:[#allocation8] sm:$0xff]
    %v772 = vpack.c.bf16 %v771, %v771
    %v773 = vpack.c.bf16 %v764, %v762
    %v774 = vpack.c.bf16 %v769, %v767
    %v779 = vunpack.c.l.b16 %v714
    %v780 = vunpack.c.l.b16 %v715
    %v781 = vunpack.c.l.b16 %v716
    %v782 = vunpack.c.l.b16 %v717
    %v783 = vpack.c.b16 %v780, %v779
    %v784 = vpack.c.b16 %v782, %v781
    %785 = vrot.lane.b32.xlu0 %v726, 56
    %v786 = vpop.permute.xlu0 %785
    %787 = vrot.lane.b32.xlu0 %v727, 56
    %v788 = vpop.permute.xlu0 %787
    %v792 = vsel %vm131, %v783, 0
    %v795 = vsel %vm131, %v784, 0
    %797 = vmatpush.bf16.msra.mxu0 0
    %798 = vmatpush.bf16.msra.mxu0 0
    %799 = vmatpush.bf16.msra.mxu0 0
    %800 = vmatpush.bf16.msra.mxu0 0
    %801 = vmatpush.bf16.msra.mxu0 0
    %802 = vmatpush.bf16.msra.mxu0 0
    %803 = vmatpush.bf16.msra.mxu0 %v788
    %804 = vmatpush.bf16.msra.mxu0 %v786
    %805 = vmatmul.bf16.gmra.mxu0 %v792
    %v806 = vpop.f32.mrf.mxu0
    %v807 = vadd.f32 0.0, %v806
    %v808 = vpop.f32.mrf.mxu0
    %v809 = vadd.f32 0.0, %v808
    %810 = vmatmul.bf16.gmra.mxu0 %v795
    %v811 = vpop.f32.mrf.mxu0
    %v812 = vadd.f32 0.0, %v811
    %v813 = vpop.f32.mrf.mxu0
    %v814 = vadd.f32 0.0, %v813
    %815 = vdwg.mxu0
    %s816 = scalar_lea.vmem [#allocation8], 8
    %v817 = vld [vmem:[%s816] sm:$0xff]
    %v818 = vpack.c.bf16 %v817, %v817
    %v819 = vpack.c.bf16 %v809, %v807
    %v820 = vpack.c.bf16 %v814, %v812
    %v822 = vsel %vm227, %v819, 0
    %v825 = vsel %vm227, %v820, 0
    %vm827 = vcmask 1043456
    %v829 = vsel %vm827, %v818, 0
    %831 = vmatpush.bf16.msra.mxu0 0
    %832 = vmatpush.bf16.msra.mxu0 0
    %833 = vmatpush.bf16.msra.mxu0 0
    %834 = vmatpush.bf16.msra.mxu0 0
    %835 = vmatpush.bf16.msra.mxu0 0
    %836 = vmatpush.bf16.msra.mxu0 0
    %837 = vmatpush.bf16.msra.mxu0 0
    %838 = vmatpush.bf16.msra.mxu0 %v829
    %839 = vmatmul.bf16.gmra.mxu0 %v822
    %v840 = vpop.f32.mrf.mxu0
    %v841 = vadd.f32 0.0, %v840
    %v842 = vpop.f32.mrf.mxu0
    %v843 = vadd.f32 0.0, %v842
    %844 = vmatmul.bf16.gmra.mxu0 %v825
    %v845 = vpop.f32.mrf.mxu0
    %v846 = vadd.f32 0.0, %v845
    %v847 = vpop.f32.mrf.mxu0
    %v848 = vadd.f32 0.0, %v847
    %849 = vdwg.mxu0
    %v851 = vsel %vm227, %v773, 0
    %v854 = vsel %vm227, %v774, 0
    %v857 = vsel %vm827, %v772, 0
    %859 = vmatpush.bf16.msra.mxu0 0
    %860 = vmatpush.bf16.msra.mxu0 0
    %861 = vmatpush.bf16.msra.mxu0 0
    %862 = vmatpush.bf16.msra.mxu0 0
    %863 = vmatpush.bf16.msra.mxu0 0
    %864 = vmatpush.bf16.msra.mxu0 0
    %865 = vmatpush.bf16.msra.mxu0 0
    %866 = vmatpush.bf16.msra.mxu0 %v857
    %867 = vmatmul.bf16.gmra.mxu0 %v851
    %v868 = vpop.f32.mrf.mxu0
    %v869 = vadd.f32 %v841, %v868
    %v870 = vpop.f32.mrf.mxu0
    %v871 = vadd.f32 %v843, %v870
    %872 = vmatmul.bf16.gmra.mxu0 %v854
    %v873 = vpop.f32.mrf.mxu0
    %v874 = vadd.f32 %v846, %v873
    %v875 = vpop.f32.mrf.mxu0
    %v876 = vadd.f32 %v848, %v875
    %877 = vdwg.mxu0
    %v882 = vunpack.c.l.b16 %v718
    %v883 = vunpack.c.l.b16 %v719
    %v884 = vunpack.c.l.b16 %v720
    %v885 = vunpack.c.l.b16 %v721
    %v886 = vpack.c.b16 %v883, %v882
    %v887 = vpack.c.b16 %v885, %v884
    %888 = vrot.lane.b32.xlu0 %v726, 48
    %v889 = vpop.permute.xlu0 %888
    %890 = vrot.lane.b32.xlu0 %v727, 48
    %v891 = vpop.permute.xlu0 %890
    %v895 = vsel %vm131, %v886, 0
    %v898 = vsel %vm131, %v887, 0
    %900 = vmatpush.bf16.msra.mxu0 0
    %901 = vmatpush.bf16.msra.mxu0 0
    %902 = vmatpush.bf16.msra.mxu0 0
    %903 = vmatpush.bf16.msra.mxu0 0
    %904 = vmatpush.bf16.msra.mxu0 0
    %905 = vmatpush.bf16.msra.mxu0 0
    %906 = vmatpush.bf16.msra.mxu0 %v891
    %907 = vmatpush.bf16.msra.mxu0 %v889
    %908 = vmatmul.bf16.gmra.mxu0 %v895
    %v909 = vpop.f32.mrf.mxu0
    %v910 = vadd.f32 0.0, %v909
    %v911 = vpop.f32.mrf.mxu0
    %v912 = vadd.f32 0.0, %v911
    %913 = vmatmul.bf16.gmra.mxu0 %v898
    %v914 = vpop.f32.mrf.mxu0
    %v915 = vadd.f32 0.0, %v914
    %v916 = vpop.f32.mrf.mxu0
    %v917 = vadd.f32 0.0, %v916
    %918 = vdwg.mxu0
    %s919 = scalar_lea.vmem [#allocation8], 16
    %v920 = vld [vmem:[%s919] sm:$0xff]
    %v921 = vpack.c.bf16 %v920, %v920
    %v922 = vpack.c.bf16 %v912, %v910
    %v923 = vpack.c.bf16 %v917, %v915
    %v925 = vsel %vm227, %v922, 0
    %v928 = vsel %vm227, %v923, 0
    %v931 = vsel %vm827, %v921, 0
    %933 = vmatpush.bf16.msra.mxu0 0
    %934 = vmatpush.bf16.msra.mxu0 0
    %935 = vmatpush.bf16.msra.mxu0 0
    %936 = vmatpush.bf16.msra.mxu0 0
    %937 = vmatpush.bf16.msra.mxu0 0
    %938 = vmatpush.bf16.msra.mxu0 0
    %939 = vmatpush.bf16.msra.mxu0 0
    %940 = vmatpush.bf16.msra.mxu0 %v931
    %941 = vmatmul.bf16.gmra.mxu0 %v925
    %v942 = vpop.f32.mrf.mxu0
    %v943 = vadd.f32 0.0, %v942
    %v944 = vpop.f32.mrf.mxu0
    %v945 = vadd.f32 0.0, %v944
    %946 = vmatmul.bf16.gmra.mxu0 %v928
    %v947 = vpop.f32.mrf.mxu0
    %v948 = vadd.f32 0.0, %v947
    %v949 = vpop.f32.mrf.mxu0
    %v950 = vadd.f32 0.0, %v949
    %951 = vdwg.mxu0
    %v952 = vadd.f32 %v869, %v943
    %v953 = vadd.f32 %v871, %v945
    %v954 = vadd.f32 %v874, %v948
    %v955 = vadd.f32 %v876, %v950
    %v960 = vunpack.c.l.b16 %v722
    %v961 = vunpack.c.l.b16 %v723
    %v962 = vunpack.c.l.b16 %v724
    %v963 = vunpack.c.l.b16 %v725
    %v964 = vpack.c.b16 %v961, %v960
    %v965 = vpack.c.b16 %v963, %v962
    %966 = vrot.lane.b32.xlu0 %v726, 40
    %v967 = vpop.permute.xlu0 %966
    %968 = vrot.lane.b32.xlu0 %v727, 40
    %v969 = vpop.permute.xlu0 %968
    %v973 = vsel %vm131, %v964, 0
    %v976 = vsel %vm131, %v965, 0
    %978 = vmatpush.bf16.msra.mxu0 0
    %979 = vmatpush.bf16.msra.mxu0 0
    %980 = vmatpush.bf16.msra.mxu0 0
    %981 = vmatpush.bf16.msra.mxu0 0
    %982 = vmatpush.bf16.msra.mxu0 0
    %983 = vmatpush.bf16.msra.mxu0 0
    %984 = vmatpush.bf16.msra.mxu0 %v969
    %985 = vmatpush.bf16.msra.mxu0 %v967
    %986 = vmatmul.bf16.gmra.mxu0 %v973
    %v987 = vpop.f32.mrf.mxu0
    %v988 = vadd.f32 0.0, %v987
    %v989 = vpop.f32.mrf.mxu0
    %v990 = vadd.f32 0.0, %v989
    %991 = vmatmul.bf16.gmra.mxu0 %v976
    %v992 = vpop.f32.mrf.mxu0
    %v993 = vadd.f32 0.0, %v992
    %v994 = vpop.f32.mrf.mxu0
    %v995 = vadd.f32 0.0, %v994
    %996 = vdwg.mxu0
    %s997 = scalar_lea.vmem [#allocation8], 24
    %v998 = vld [vmem:[%s997] sm:$0xff]
    %v999 = vpack.c.bf16 %v998, %v998
    %v1000 = vpack.c.bf16 %v990, %v988
    %v1001 = vpack.c.bf16 %v995, %v993
    %v1003 = vsel %vm227, %v1000, 0
    %v1006 = vsel %vm227, %v1001, 0
    %v1009 = vsel %vm827, %v999, 0
    %1011 = vmatpush.bf16.msra.mxu0 0
    %1012 = vmatpush.bf16.msra.mxu0 0
    %1013 = vmatpush.bf16.msra.mxu0 0
    %1014 = vmatpush.bf16.msra.mxu0 0
    %1015 = vmatpush.bf16.msra.mxu0 0
    %1016 = vmatpush.bf16.msra.mxu0 0
    %1017 = vmatpush.bf16.msra.mxu0 0
    %1018 = vmatpush.bf16.msra.mxu0 %v1009
    %1019 = vmatmul.bf16.gmra.mxu0 %v1003
    %v1020 = vpop.f32.mrf.mxu0
    %v1021 = vadd.f32 0.0, %v1020
    %v1022 = vpop.f32.mrf.mxu0
    %v1023 = vadd.f32 0.0, %v1022
    %1024 = vmatmul.bf16.gmra.mxu0 %v1006
    %v1025 = vpop.f32.mrf.mxu0
    %v1026 = vadd.f32 0.0, %v1025
    %v1027 = vpop.f32.mrf.mxu0
    %v1028 = vadd.f32 0.0, %v1027
    %1029 = vdwg.mxu0
    %v1030 = vadd.f32 %v952, %v1021
    %v1031 = vadd.f32 %v953, %v1023
    %v1032 = vadd.f32 %v954, %v1026
    %v1033 = vadd.f32 %v955, %v1028
    %v1034 = vld [vmem:[%s5] sm:$0x1]
    %v1036 = vperm.slane %v1034, 0
    %v1038 = vadd.f32 %v1030, %v1036
    %v1039 = vadd.f32 %v1031, %v1036
    %v1040 = vadd.f32 %v1032, %v1036
    %v1041 = vadd.f32 %v1033, %v1036
    %v1042 = vmax.f32 %v1038, 0.0
    %v1043 = vmax.f32 %v1039, 0.0
    %v1044 = vmax.f32 %v1040, 0.0
    %v1045 = vmax.f32 %v1041, 0.0
    %vm1046 = vcmp.ne.f32.partialorder %v1038, %v1038
    %vm1047 = vcmp.ne.f32.partialorder %v1039, %v1039
    %vm1048 = vcmp.ne.f32.partialorder %v1040, %v1040
    %vm1049 = vcmp.ne.f32.partialorder %v1041, %v1041
    %v1050 = vadd.f32 %v1038, 0.0
    %v1051 = vadd.f32 %v1039, 0.0
    %v1052 = vadd.f32 %v1040, 0.0
    %v1053 = vadd.f32 %v1041, 0.0
    %v1054 = vand.u32 2147483647, %v1038
    %v1055 = vand.u32 2147483647, %v1039
    %v1056 = vand.u32 2147483647, %v1040
    %v1057 = vand.u32 2147483647, %v1041
    %v1058 = vsub.f32 0.0, %v1054
    %v1059 = vsub.f32 0.0, %v1055
    %v1060 = vsub.f32 0.0, %v1056
    %v1061 = vsub.f32 0.0, %v1057
    %v1062 = vmul.f32 %v1058, 1.442695
    %v1063 = vpow.pop %v1062
    %v1064 = vmul.f32 %v1059, 1.442695
    %v1065 = vpow.pop %v1064
    %v1066 = vmul.f32 %v1060, 1.442695
    %v1067 = vpow.pop %v1066
    %v1068 = vmul.f32 %v1061, 1.442695
    %v1069 = vpow.pop %v1068
    %v1070 = vadd.f32 %v1063, 1.0
    %v1071 = vlog2.pop %v1070
    %v1072 = vmul.f32 %v1071, 0.6931472
    %v1073 = vmul.f32 -0.5, %v1063
    %v1074 = vadd.f32 %v1073, 1.0
    %v1075 = vmul.f32 %v1074, %v1063
    %v1076 = vand.u32 2147483647, %v1063
    %vm1077 = vcmp.lt.f32.partialorder %v1076, 0.0004427343
    %v1078 = vsel %vm1077, %v1075, %v1072
    %v1079 = vadd.f32 %v1065, 1.0
    %v1080 = vlog2.pop %v1079
    %v1081 = vmul.f32 %v1080, 0.6931472
    %v1082 = vmul.f32 -0.5, %v1065
    %v1083 = vadd.f32 %v1082, 1.0
    %v1084 = vmul.f32 %v1083, %v1065
    %v1085 = vand.u32 2147483647, %v1065
    %vm1086 = vcmp.lt.f32.partialorder %v1085, 0.0004427343
    %v1087 = vsel %vm1086, %v1084, %v1081
    %v1088 = vadd.f32 %v1067, 1.0
    %v1089 = vlog2.pop %v1088
    %v1090 = vmul.f32 %v1089, 0.6931472
    %v1091 = vmul.f32 -0.5, %v1067
    %v1092 = vadd.f32 %v1091, 1.0
    %v1093 = vmul.f32 %v1092, %v1067
    %v1094 = vand.u32 2147483647, %v1067
    %vm1095 = vcmp.lt.f32.partialorder %v1094, 0.0004427343
    %v1096 = vsel %vm1095, %v1093, %v1090
    %v1097 = vadd.f32 %v1069, 1.0
    %v1098 = vlog2.pop %v1097
    %v1099 = vmul.f32 %v1098, 0.6931472
    %v1100 = vmul.f32 -0.5, %v1069
    %v1101 = vadd.f32 %v1100, 1.0
    %v1102 = vmul.f32 %v1101, %v1069
    %v1103 = vand.u32 2147483647, %v1069
    %vm1104 = vcmp.lt.f32.partialorder %v1103, 0.0004427343
    %v1105 = vsel %vm1104, %v1102, %v1099
    %v1106 = vadd.f32 %v1042, %v1078
    %v1107 = vadd.f32 %v1043, %v1087
    %v1108 = vadd.f32 %v1044, %v1096
    %v1109 = vadd.f32 %v1045, %v1105
    %v1110 = vsel %vm1046, %v1050, %v1106
    %v1111 = vsel %vm1047, %v1051, %v1107
    %v1112 = vsel %vm1048, %v1052, %v1108
    %v1113 = vsel %vm1049, %v1053, %v1109
    %v1114 = vtanh.pop %v1110
    %v1115 = vtanh.pop %v1111
    %v1116 = vtanh.pop %v1112
    %v1117 = vtanh.pop %v1113
    %v1118 = vmul.f32 %v1038, %v1114
    %v1119 = vmul.f32 %v1039, %v1115
    %v1120 = vmul.f32 %v1040, %v1116
    %v1121 = vmul.f32 %v1041, %v1117
    %1122 = vst.msk [vmem:[#allocation10] sm:$0xff] %vm131, %v1118
    %1123 = vst.msk [vmem:[#allocation10 + $0x8] sm:$0xff] %vm131, %v1119
    %1124 = vst.msk [vmem:[#allocation10 + $0x10] sm:$0xff] %vm131, %v1120
    %1125 = vst.msk [vmem:[#allocation10 + $0x18] sm:$0xff] %vm131, %v1121
    // Predicated region
    $region42: #{tpu_custom_call.1} parent=1 // pred_check
      _
    $region43: #{tpu_custom_call.1} parent=1 // pred_check_branch
      %1127 = sbr.rel (0) target = $region45
    $region44: #{tpu_custom_call.1} parent=1 // pred_region
      %1129 = vsyncadd [#allocation4], 0
      %s1130 = sshll.u32 [#allocation10], 4
      %s1131 = int_to_ptr.vmem [resolvable:$true] %s1130
      %s1132 = sshll.u32 %s6, 4
      %s1133 = int_to_ptr.hbm [resolvable:$true] %s1132
      %1138 = dma.vmem_to_hbm [thread:$0]  %s1131, 512, %s1133, [#allocation4], 128, 128, 8
    $region45: #{tpu_custom_call.1} parent=1 // pred_fallthru
      _
    // Predicated region
    $region46: #{tpu_custom_call.1} parent=1 // pred_check
      _
    $region47: #{tpu_custom_call.1} parent=1 // pred_check_branch
      %1140 = sbr.rel (0) target = $region49
    $region48: #{tpu_custom_call.1} parent=1 // pred_region
      %1142 = dma.done [#allocation4], 512
    $region49: #{tpu_custom_call.1} parent=1 // pred_fallthru
      _
    %1143 = vsyncpa [#allocation3], 1
    %1144 = vsyncpa [#allocation6], 1
    %1145 = vsyncpa [#allocation9], 1
    %1146 = vsyncpa [#allocation4], 1

</llo_original>
